<compile_context>
chip_gen: v6e
topology: v6e:2x2x1
jax: 0.10.0
libtpu: 0.0.40
codegen_flags: <defaults>
</compile_context>

<pallas_src>
import jax
import jax.numpy as jnp
from jax import lax
from jax.experimental import pallas as pl
from jax.experimental.pallas import tpu as pltpu


def _make_kernel(NB, C, Cout, H, W, compute_dtype):
    HW = H * W
    cdt = compute_dtype

    def kernel(x_ref, dww_ref, pwwT_ref, pwb_ref, o_ref):
        # x_ref   : (NB, C, HW)    input block, channels on sublanes, H*W on lanes
        # dww_ref : (C, 9)         depthwise weights, tap t = dh*3+dw on lanes
        # pwwT_ref: (Cout, C)      pointwise weights (transposed), compute dtype
        # pwb_ref : (Cout, 1)      pointwise bias with depthwise bias folded in (f32)
        # o_ref   : (NB, Cout, HW) lane-dense, channels-major f32 output

        # ---- hoisted per-grid-step prep (amortized over the NB batch loop) ---
        # Lane masks for the left/right image borders (w == 0 / w == W-1).  The
        # top/bottom (h) borders need no mask: they fall off the ends of the
        # flat H*W axis and are zero-filled by the shifted-view construction.
        w_idx = lax.broadcasted_iota(jnp.int32, (1, HW), 1) % W
        mask_l = jnp.where(w_idx != 0, 1.0, 0.0).astype(cdt)      # valid for dw == 0
        mask_r = jnp.where(w_idx != W - 1, 1.0, 0.0).astype(cdt)  # valid for dw == 2
        masks = (mask_l, jnp.ones((1, HW), cdt), mask_r)

        dww = dww_ref[...].astype(cdt)                            # (C, 9)
        # 9 masked weight planes (C, HW): border masking is folded into the
        # weight so the per-tap inner work is just one mul + add on the VPU.
        wplanes = []
        for dh in range(3):
            for dw in range(3):
                col = dww[:, dh * 3 + dw:dh * 3 + dw + 1]         # (C, 1)
                wplanes.append(col * masks[dw])                   # (C, HW)

        pwwT = pwwT_ref[...].astype(cdt)                          # (Cout, C)
        pwb = pwb_ref[...]                                        # (Cout, 1) f32

        def shifted(xb, s):
            # result[:, p] = xb[:, p + s] if 0 <= p + s < HW else 0
            if s == 0:
                return xb
            pad = jnp.zeros((C, abs(s)), xb.dtype)
            if s > 0:
                return jnp.concatenate([xb[:, s:], pad], axis=1)
            return jnp.concatenate([pad, xb[:, :s]], axis=1)

        # ---- per-batch streaming: depthwise taps (VPU/XLU) + 1x1 conv (MXU) --
        for b in range(NB):                                       # static unroll
            xb = x_ref[b].astype(cdt)                             # (C, HW)
            acc = None                                            # f32 tap accumulator
            for dh in range(3):
                for dw in range(3):
                    s = (dh - 1) * W + (dw - 1)
                    term = shifted(xb, s) * wplanes[dh * 3 + dw]  # compute dtype
                    acc = term.astype(jnp.float32) if acc is None else acc + term
            # MXU: (Cout, C) @ (C, HW).  RHS is already channels-on-sublanes,
            # so no transpose of the large operand is implied.
            out_b = jnp.dot(pwwT, acc.astype(cdt),
                            preferred_element_type=jnp.float32)   # (Cout, HW) f32
            o_ref[b] = (out_b + pwb).astype(o_ref.dtype)

    return kernel


def _pick_batch_block(n, per_batch_bytes, fixed_bytes, budget_bytes, max_nb=32):
    """Largest divisor of n fitting the VMEM budget, preferring an EVEN number
    of grid steps (>=2) so both v7x TensorCores get work."""
    feasible = [d for d in range(1, min(n, max_nb) + 1)
                if n % d == 0 and fixed_bytes + d * per_batch_bytes <= budget_bytes]
    if not feasible:
        feasible = [1]
    even = [d for d in feasible if (n // d) >= 2 and (n // d) % 2 == 0]
    if even:
        return max(even)
    multi = [d for d in feasible if (n // d) >= 2]
    if multi:
        return max(multi)
    return max(feasible)


def depthwise_conv_pallas(x_nchw, dw_w, dw_b, pw_w, pw_b, *,
                          compute_dtype=jnp.bfloat16, batch_block=None):
    """Forward pass of DepthWiseConv.

    x_nchw : (N, C, H, W)      input (f32 or bf16)
    dw_w   : (C, 1, 3, 3)      depthwise conv weight (PyTorch layout)
    dw_b   : (C,)              depthwise conv bias
    pw_w   : (Cout, C, 1, 1)   pointwise conv weight (PyTorch layout)
    pw_b   : (Cout,)           pointwise conv bias
    returns (N, Cout, H, W)    float32
    """
    N, C, H, W = x_nchw.shape
    Cout = pw_w.shape[0]
    HW = H * W

    # Free contiguous reshape: consume NCHW directly, no HBM transpose pass.
    x_flat = x_nchw.reshape(N, C, HW)

    # Small weights: reshape + cast (negligible traffic).
    dww = dw_w.reshape(C, 9).astype(compute_dtype)                # (C, 9), t = dh*3+dw
    pwwT_f32 = pw_w[:, :, 0, 0].astype(jnp.float32)               # (Cout, C)
    # Fold depthwise bias into pointwise bias:
    #   (acc + dwb) @ pww + pwb  ==  acc @ pww + (pww^T @ dwb + pwb)
    pwb_eff = (pw_b.astype(jnp.float32) + pwwT_f32 @ dw_b.astype(jnp.float32))
    pwb_eff = pwb_eff.reshape(Cout, 1)
    pwwT = pwwT_f32.astype(compute_dtype)

    # ---- VMEM budgeting (v7x: 64 MiB physical per TC) ----------------------
    cbytes = jnp.dtype(compute_dtype).itemsize
    xbytes = jnp.dtype(x_nchw.dtype).itemsize
    per_batch = (2 * C * HW * xbytes        # double-buffered input block
                 + 2 * Cout * HW * 4        # double-buffered f32 output block
                 + C * HW * 4               # f32 depthwise accumulator
                 + 2 * C * HW * cbytes      # casted xb + shifted temporary
                 + Cout * HW * 4)           # streamed matmul result (per batch)
    fixed = 10 * C * HW * cbytes + (Cout * C + 9 * C + Cout) * 4  # weight planes etc.
    budget = 32 * 1024 * 1024

    if batch_block is None:
        NB = _pick_batch_block(N, per_batch, fixed, budget)
    else:
        NB = batch_block
    assert N % NB == 0, "batch_block must divide the batch size"

    vmem_limit = int(min(48 * 1024 * 1024,
                         max(32 * 1024 * 1024, 2 * (fixed + NB * per_batch))))

    kernel = _make_kernel(NB, C, Cout, H, W, compute_dtype)

    out_flat = pl.pallas_call(
        kernel,
        out_shape=jax.ShapeDtypeStruct((N, Cout, HW), jnp.float32),
        grid_spec=pltpu.PrefetchScalarGridSpec(
            num_scalar_prefetch=0,
            grid=(N // NB,),
            in_specs=[
                pl.BlockSpec((NB, C, HW), lambda n: (n, 0, 0)),
                pl.BlockSpec((C, 9), lambda n: (0, 0)),
                pl.BlockSpec((Cout, C), lambda n: (0, 0)),
                pl.BlockSpec((Cout, 1), lambda n: (0, 0)),
            ],
            out_specs=pl.BlockSpec((NB, Cout, HW), lambda n: (n, 0, 0)),
        ),
        compiler_params=pltpu.CompilerParams(
            dimension_semantics=("parallel",),
            vmem_limit_bytes=vmem_limit),
    )(x_flat, dww, pwwT, pwb_eff)

    # Contiguous last-dim split: free reshape, no data movement.
    return out_flat.reshape(N, Cout, H, W)


def reference_forward(x_nchw, dw_w, dw_b, pw_w, pw_b):
    """Pure-JAX f32 reference matching the PyTorch module semantics."""
    C = x_nchw.shape[1]
    y = lax.conv_general_dilated(
        x_nchw, dw_w, window_strides=(1, 1), padding=((1, 1), (1, 1)),
        dimension_numbers=("NCHW", "OIHW", "NCHW"), feature_group_count=C)
    y = y + dw_b[None, :, None, None]
    z = lax.conv_general_dilated(
        y, pw_w, window_strides=(1, 1), padding=((0, 0), (0, 0)),
        dimension_numbers=("NCHW", "OIHW", "NCHW"))
    z = z + pw_b[None, :, None, None]
    return z


if __name__ == "__main__":
    # Small deterministic setup: batch=2, in_channel=4, out_channel=8, 16x16.
    N, C, Cout, H, W = 2, 4, 8, 16, 16

    key = jax.random.PRNGKey(0)
    k_x, k_dw, k_dwb, k_pw, k_pwb = jax.random.split(key, 5)

    x = jax.random.normal(k_x, (N, C, H, W), jnp.float32)
    dw_w = jax.random.normal(k_dw, (C, 1, 3, 3), jnp.float32) * 0.1
    dw_b = jax.random.normal(k_dwb, (C,), jnp.float32) * 0.1
    pw_w = jax.random.normal(k_pw, (Cout, C, 1, 1), jnp.float32) * 0.1
    pw_b = jax.random.normal(k_pwb, (Cout,), jnp.float32) * 0.1

    ref = jax.block_until_ready(reference_forward(x, dw_w, dw_b, pw_w, pw_b))

    # f32 compute path: tight correctness check.
    out_f32 = jax.block_until_ready(
        depthwise_conv_pallas(x, dw_w, dw_b, pw_w, pw_b,
                              compute_dtype=jnp.float32))
    assert out_f32.shape == (N, Cout, H, W), out_f32.shape
    assert jnp.allclose(out_f32, ref, atol=1e-4, rtol=1e-4), "f32 mismatch vs reference"

    # bf16 compute path (default perf configuration on v6e/v7x): bf16 tap
    # products + bf16 MXU operands, f32 accumulation -> bf16-level tolerance.
    out_bf16 = jax.block_until_ready(
        depthwise_conv_pallas(x, dw_w, dw_b, pw_w, pw_b,
                              compute_dtype=jnp.bfloat16))
    assert out_bf16.shape == (N, Cout, H, W), out_bf16.shape
    assert jnp.allclose(out_bf16, ref, atol=5e-2, rtol=5e-2), "bf16 mismatch vs reference"

    print("KERNEL_OK")
</pallas_src>

<mosaic_0001>
module attributes {stable_mosaic.version = 11 : i64} {
  func.func @kernel(%arg0: i32, %arg1: memref<1x4x256xf32, #tpu.memory_space<vmem>>, %arg2: memref<4x9xf32, #tpu.memory_space<vmem>>, %arg3: memref<8x4xf32, #tpu.memory_space<vmem>>, %arg4: memref<8x1xf32, #tpu.memory_space<vmem>>, %arg5: memref<1x8x256xf32, #tpu.memory_space<vmem>>) attributes {dimension_semantics = [#tpu.dimension_semantics<parallel>], iteration_bounds = array<i64: 2>, scalar_prefetch = 0 : i64, scratch_operands = 0 : i64, tpu.core_type = #tpu.core_type<tc>, window_params = [{transform_indices = @transform_0, window_bounds = array<i64: 1, 4, 256>}, {pipeline_mode = #tpu.pipeline_mode<synchronous>, transform_indices = @transform_1, window_bounds = array<i64: 4, 9>}, {pipeline_mode = #tpu.pipeline_mode<synchronous>, transform_indices = @transform_2, window_bounds = array<i64: 8, 4>}, {pipeline_mode = #tpu.pipeline_mode<synchronous>, transform_indices = @transform_3, window_bounds = array<i64: 8, 1>}, {transform_indices = @transform_4, window_bounds = array<i64: 1, 8, 256>}]} {
    %0 = tpu.iota {dimensions = array<i32: 1>} : vector<1x256xi32>
    %c16_i32 = arith.constant 16 : i32
    %c0_i32 = arith.constant 0 : i32
    %1 = arith.cmpi eq, %c16_i32, %c0_i32 : i32
    %c1_i32 = arith.constant 1 : i32
    %2 = arith.select %1, %c1_i32, %c16_i32 : i32
    %3 = vector.broadcast %2 : i32 to vector<1x256xi32>
    %4 = arith.remsi %0, %3 : vector<1x256xi32>
    %c0_i32_0 = arith.constant 0 : i32
    %5 = vector.broadcast %c0_i32_0 : i32 to vector<1x256xi32>
    %6 = arith.cmpi ne, %4, %5 : vector<1x256xi32>
    %c0_i32_1 = arith.constant 0 : i32
    %7 = vector.broadcast %c0_i32_1 : i32 to vector<1x256xi32>
    %8 = arith.cmpi slt, %4, %7 : vector<1x256xi32>
    %c0_i32_2 = arith.constant 0 : i32
    %9 = arith.cmpi slt, %2, %c0_i32_2 : i32
    %10 = vector.broadcast %9 : i1 to vector<1x256xi1>
    %11 = vector.broadcast %10 : vector<1x256xi1> to vector<1x256xi1>
    %12 = arith.xori %8, %11 : vector<1x256xi1>
    %13 = arith.andi %12, %6 : vector<1x256xi1>
    %14 = vector.broadcast %2 : i32 to vector<1x256xi32>
    %15 = arith.addi %4, %14 : vector<1x256xi32>
    %16 = arith.select %13, %15, %4 : vector<1x256xi1>, vector<1x256xi32>
    %c0_i32_3 = arith.constant 0 : i32
    %17 = vector.broadcast %c0_i32_3 : i32 to vector<1x256xi32>
    %18 = arith.cmpi ne, %16, %17 : vector<1x256xi32>
    %cst = arith.constant 1.000000e+00 : f32
    %cst_4 = arith.constant 0.000000e+00 : f32
    %19 = vector.broadcast %cst : f32 to vector<1x256xf32>
    %20 = vector.broadcast %cst_4 : f32 to vector<1x256xf32>
    %21 = arith.select %18, %19, %20 : vector<1x256xi1>, vector<1x256xf32>
    %c15_i32 = arith.constant 15 : i32
    %22 = vector.broadcast %c15_i32 : i32 to vector<1x256xi32>
    %23 = arith.cmpi ne, %16, %22 : vector<1x256xi32>
    %cst_5 = arith.constant 1.000000e+00 : f32
    %cst_6 = arith.constant 0.000000e+00 : f32
    %24 = vector.broadcast %cst_5 : f32 to vector<1x256xf32>
    %25 = vector.broadcast %cst_6 : f32 to vector<1x256xf32>
    %26 = arith.select %23, %24, %25 : vector<1x256xi1>, vector<1x256xf32>
    %cst_7 = arith.constant 1.000000e+00 : f32
    %27 = vector.broadcast %cst_7 : f32 to vector<1x256xf32>
    %c0 = arith.constant 0 : index
    %c0_8 = arith.constant 0 : index
    %28 = vector.load %arg2[%c0, %c0_8] : memref<4x9xf32, #tpu.memory_space<vmem>>, vector<4x9xf32>
    %29 = vector.extract_strided_slice %28 {offsets = [0, 0], sizes = [4, 1], strides = [1, 1]} : vector<4x9xf32> to vector<4x1xf32>
    %30 = vector.broadcast %29 : vector<4x1xf32> to vector<4x256xf32>
    %31 = vector.broadcast %21 : vector<1x256xf32> to vector<4x256xf32>
    %32 = arith.mulf %30, %31 : vector<4x256xf32>
    %33 = vector.extract_strided_slice %28 {offsets = [0, 1], sizes = [4, 1], strides = [1, 1]} : vector<4x9xf32> to vector<4x1xf32>
    %34 = vector.broadcast %33 : vector<4x1xf32> to vector<4x256xf32>
    %35 = vector.broadcast %27 : vector<1x256xf32> to vector<4x256xf32>
    %36 = arith.mulf %34, %35 : vector<4x256xf32>
    %37 = vector.extract_strided_slice %28 {offsets = [0, 2], sizes = [4, 1], strides = [1, 1]} : vector<4x9xf32> to vector<4x1xf32>
    %38 = vector.broadcast %37 : vector<4x1xf32> to vector<4x256xf32>
    %39 = vector.broadcast %26 : vector<1x256xf32> to vector<4x256xf32>
    %40 = arith.mulf %38, %39 : vector<4x256xf32>
    %41 = vector.extract_strided_slice %28 {offsets = [0, 3], sizes = [4, 1], strides = [1, 1]} : vector<4x9xf32> to vector<4x1xf32>
    %42 = vector.broadcast %41 : vector<4x1xf32> to vector<4x256xf32>
    %43 = vector.broadcast %21 : vector<1x256xf32> to vector<4x256xf32>
    %44 = arith.mulf %42, %43 : vector<4x256xf32>
    %45 = vector.extract_strided_slice %28 {offsets = [0, 4], sizes = [4, 1], strides = [1, 1]} : vector<4x9xf32> to vector<4x1xf32>
    %46 = vector.broadcast %45 : vector<4x1xf32> to vector<4x256xf32>
    %47 = vector.broadcast %27 : vector<1x256xf32> to vector<4x256xf32>
    %48 = arith.mulf %46, %47 : vector<4x256xf32>
    %49 = vector.extract_strided_slice %28 {offsets = [0, 5], sizes = [4, 1], strides = [1, 1]} : vector<4x9xf32> to vector<4x1xf32>
    %50 = vector.broadcast %49 : vector<4x1xf32> to vector<4x256xf32>
    %51 = vector.broadcast %26 : vector<1x256xf32> to vector<4x256xf32>
    %52 = arith.mulf %50, %51 : vector<4x256xf32>
    %53 = vector.extract_strided_slice %28 {offsets = [0, 6], sizes = [4, 1], strides = [1, 1]} : vector<4x9xf32> to vector<4x1xf32>
    %54 = vector.broadcast %53 : vector<4x1xf32> to vector<4x256xf32>
    %55 = vector.broadcast %21 : vector<1x256xf32> to vector<4x256xf32>
    %56 = arith.mulf %54, %55 : vector<4x256xf32>
    %57 = vector.extract_strided_slice %28 {offsets = [0, 7], sizes = [4, 1], strides = [1, 1]} : vector<4x9xf32> to vector<4x1xf32>
    %58 = vector.broadcast %57 : vector<4x1xf32> to vector<4x256xf32>
    %59 = vector.broadcast %27 : vector<1x256xf32> to vector<4x256xf32>
    %60 = arith.mulf %58, %59 : vector<4x256xf32>
    %61 = vector.extract_strided_slice %28 {offsets = [0, 8], sizes = [4, 1], strides = [1, 1]} : vector<4x9xf32> to vector<4x1xf32>
    %62 = vector.broadcast %61 : vector<4x1xf32> to vector<4x256xf32>
    %63 = vector.broadcast %26 : vector<1x256xf32> to vector<4x256xf32>
    %64 = arith.mulf %62, %63 : vector<4x256xf32>
    %c0_9 = arith.constant 0 : index
    %c0_10 = arith.constant 0 : index
    %65 = vector.load %arg3[%c0_9, %c0_10] : memref<8x4xf32, #tpu.memory_space<vmem>>, vector<8x4xf32>
    %c0_11 = arith.constant 0 : index
    %c0_12 = arith.constant 0 : index
    %66 = vector.load %arg4[%c0_11, %c0_12] : memref<8x1xf32, #tpu.memory_space<vmem>>, vector<8x1xf32>
    %c0_13 = arith.constant 0 : index
    %c0_14 = arith.constant 0 : index
    %c0_15 = arith.constant 0 : index
    %67 = vector.load %arg1[%c0_13, %c0_14, %c0_15] : memref<1x4x256xf32, #tpu.memory_space<vmem>>, vector<1x4x256xf32>
    %68 = vector.shape_cast %67 : vector<1x4x256xf32> to vector<4x256xf32>
    %cst_16 = arith.constant 0.000000e+00 : f32
    %69 = vector.broadcast %cst_16 : f32 to vector<4x17xf32>
    %70 = vector.extract_strided_slice %68 {offsets = [0, 0], sizes = [4, 239], strides = [1, 1]} : vector<4x256xf32> to vector<4x239xf32>
    %71 = tpu.concatenate %69, %70 in 1 : vector<4x17xf32>, vector<4x239xf32> -> vector<4x256xf32>
    %72 = arith.mulf %71, %32 : vector<4x256xf32>
    %cst_17 = arith.constant 0.000000e+00 : f32
    %73 = vector.broadcast %cst_17 : f32 to vector<4x16xf32>
    %74 = vector.extract_strided_slice %68 {offsets = [0, 0], sizes = [4, 240], strides = [1, 1]} : vector<4x256xf32> to vector<4x240xf32>
    %75 = tpu.concatenate %73, %74 in 1 : vector<4x16xf32>, vector<4x240xf32> -> vector<4x256xf32>
    %76 = arith.mulf %75, %36 : vector<4x256xf32>
    %77 = arith.addf %72, %76 : vector<4x256xf32>
    %cst_18 = arith.constant 0.000000e+00 : f32
    %78 = vector.broadcast %cst_18 : f32 to vector<4x15xf32>
    %79 = vector.extract_strided_slice %68 {offsets = [0, 0], sizes = [4, 241], strides = [1, 1]} : vector<4x256xf32> to vector<4x241xf32>
    %80 = tpu.concatenate %78, %79 in 1 : vector<4x15xf32>, vector<4x241xf32> -> vector<4x256xf32>
    %81 = arith.mulf %80, %40 : vector<4x256xf32>
    %82 = arith.addf %77, %81 : vector<4x256xf32>
    %cst_19 = arith.constant 0.000000e+00 : f32
    %83 = vector.broadcast %cst_19 : f32 to vector<4x1xf32>
    %84 = vector.extract_strided_slice %68 {offsets = [0, 0], sizes = [4, 255], strides = [1, 1]} : vector<4x256xf32> to vector<4x255xf32>
    %85 = tpu.concatenate %83, %84 in 1 : vector<4x1xf32>, vector<4x255xf32> -> vector<4x256xf32>
    %86 = arith.mulf %85, %44 : vector<4x256xf32>
    %87 = arith.addf %82, %86 : vector<4x256xf32>
    %88 = arith.mulf %68, %48 : vector<4x256xf32>
    %89 = arith.addf %87, %88 : vector<4x256xf32>
    %cst_20 = arith.constant 0.000000e+00 : f32
    %90 = vector.broadcast %cst_20 : f32 to vector<4x1xf32>
    %91 = vector.extract_strided_slice %68 {offsets = [0, 1], sizes = [4, 255], strides = [1, 1]} : vector<4x256xf32> to vector<4x255xf32>
    %92 = tpu.concatenate %91, %90 in 1 : vector<4x255xf32>, vector<4x1xf32> -> vector<4x256xf32>
    %93 = arith.mulf %92, %52 : vector<4x256xf32>
    %94 = arith.addf %89, %93 : vector<4x256xf32>
    %cst_21 = arith.constant 0.000000e+00 : f32
    %95 = vector.broadcast %cst_21 : f32 to vector<4x15xf32>
    %96 = vector.extract_strided_slice %68 {offsets = [0, 15], sizes = [4, 241], strides = [1, 1]} : vector<4x256xf32> to vector<4x241xf32>
    %97 = tpu.concatenate %96, %95 in 1 : vector<4x241xf32>, vector<4x15xf32> -> vector<4x256xf32>
    %98 = arith.mulf %97, %56 : vector<4x256xf32>
    %99 = arith.addf %94, %98 : vector<4x256xf32>
    %cst_22 = arith.constant 0.000000e+00 : f32
    %100 = vector.broadcast %cst_22 : f32 to vector<4x16xf32>
    %101 = vector.extract_strided_slice %68 {offsets = [0, 16], sizes = [4, 240], strides = [1, 1]} : vector<4x256xf32> to vector<4x240xf32>
    %102 = tpu.concatenate %101, %100 in 1 : vector<4x240xf32>, vector<4x16xf32> -> vector<4x256xf32>
    %103 = arith.mulf %102, %60 : vector<4x256xf32>
    %104 = arith.addf %99, %103 : vector<4x256xf32>
    %cst_23 = arith.constant 0.000000e+00 : f32
    %105 = vector.broadcast %cst_23 : f32 to vector<4x17xf32>
    %106 = vector.extract_strided_slice %68 {offsets = [0, 17], sizes = [4, 239], strides = [1, 1]} : vector<4x256xf32> to vector<4x239xf32>
    %107 = tpu.concatenate %106, %105 in 1 : vector<4x239xf32>, vector<4x17xf32> -> vector<4x256xf32>
    %108 = arith.mulf %107, %64 : vector<4x256xf32>
    %109 = arith.addf %104, %108 : vector<4x256xf32>
    %cst_24 = arith.constant dense<0.000000e+00> : vector<8x256xf32>
    %110 = tpu.matmul %65, %109, %cst_24 {dimension_numbers = #tpu.dot_dimension_numbers<[1], [0], [0], [1], [0, 0, 1, 1], [], []>} : vector<8x4xf32>, vector<4x256xf32>, vector<8x256xf32> -> vector<8x256xf32>
    %111 = vector.broadcast %66 : vector<8x1xf32> to vector<8x256xf32>
    %112 = arith.addf %110, %111 : vector<8x256xf32>
    %c0_25 = arith.constant 0 : index
    %c0_26 = arith.constant 0 : index
    %c0_27 = arith.constant 0 : index
    %113 = vector.load %arg5[%c0_25, %c0_26, %c0_27] : memref<1x8x256xf32, #tpu.memory_space<vmem>>, vector<1x8x256xf32>
    %114 = vector.shape_cast %113 : vector<1x8x256xf32> to vector<8x256xf32>
    %115 = vector.shape_cast %112 : vector<8x256xf32> to vector<1x8x256xf32>
    tpu.vector_store %arg5[%c0_25, %c0_26, %c0_27], %115 {strides = array<i32>} : memref<1x8x256xf32, #tpu.memory_space<vmem>>, vector<1x8x256xf32>,
    return
  }
  func.func @transform_0(%arg0: i32) -> (i32, i32, i32) {
    %c0_i32 = arith.constant 0 : i32
    %c0_i32_0 = arith.constant 0 : i32
    %c0_i32_1 = arith.constant 0 : i32
    return %arg0, %c0_i32, %c0_i32_0 : i32, i32, i32
  }
  func.func @transform_1(%arg0: i32) -> (i32, i32) {
    %c0_i32 = arith.constant 0 : i32
    %c0_i32_0 = arith.constant 0 : i32
    %c0_i32_1 = arith.constant 0 : i32
    return %c0_i32, %c0_i32_0 : i32, i32
  }
  func.func @transform_2(%arg0: i32) -> (i32, i32) {
    %c0_i32 = arith.constant 0 : i32
    %c0_i32_0 = arith.constant 0 : i32
    %c0_i32_1 = arith.constant 0 : i32
    return %c0_i32, %c0_i32_0 : i32, i32
  }
  func.func @transform_3(%arg0: i32) -> (i32, i32) {
    %c0_i32 = arith.constant 0 : i32
    %c0_i32_0 = arith.constant 0 : i32
    %c0_i32_1 = arith.constant 0 : i32
    return %c0_i32, %c0_i32_0 : i32, i32
  }
  func.func @transform_4(%arg0: i32) -> (i32, i32, i32) {
    %c0_i32 = arith.constant 0 : i32
    %c0_i32_0 = arith.constant 0 : i32
    %c0_i32_1 = arith.constant 0 : i32
    return %arg0, %c0_i32, %c0_i32_0 : i32, i32, i32
  }
}

</mosaic_0001>

<llo_original>
// kernel: tpu_custom_call.1
$region0: #{tpu_custom_call.1}
  #allocation0 [shape = 'u32[]', space=smem, size = 0x4, offset = 0x4, fixed_abs, tag = 'smem constant byte address 0x4 - core index']
  #allocation1 [shape = 'u32[144,128]{1,0:T(1,128)}', space=vmem, size = 0x12000, scoped, tag = 'internal scratch']
  %s0 = inlined_call_operand.vmem [shape: f32[2,4,256], index: 0, kind: input, shape index: {}]
  %s1 = inlined_call_operand.vmem [shape: f32[4,9], index: 1, kind: input, shape index: {}]
  %s2 = inlined_call_operand.vmem [shape: f32[8,4], index: 2, kind: input, shape index: {}]
  %s3 = inlined_call_operand.vmem [shape: f32[8,1], index: 3, kind: input, shape index: {}]
  %s4 = inlined_call_operand.hbm [shape: f32[2,8,256], index: 4, kind: output, shape index: {}]
  %s5 = sld [smem:[#allocation0]]
  $region49: #{tpu_custom_call.1} parent=0
    _
  %s7 = ssub.s32 1, %s5
  %s8 = scalar_select 0, %s7, %s5
  $region1: #{tpu_custom_call.1} parent=0
    #allocation2 [shape = 'u8[16384]{0}', space=vmem, size = 0x4000, scoped, tag = 'output window, operand 0']
    #allocation3 [shape = 's32[2]{0}', space=sflag, size = 0x8, scoped, tag = 'scoped memory for tpu_custom_call.1']
    %9 = vsyncpa [#allocation3], 0
    %s10 = scalar_lea.sflag [#allocation3], 1
    %11 = vsyncpa %s10, 0
    loop: start=0, step=1, limit=4
    $region2: #{tpu_custom_call.1} parent=1 // loop_pre_header
      _
    $region3: #{tpu_custom_call.1} parent=1 // loop_header
      %s13 = sphi 0, %s17
      %p14 = scmp.ge.s32.totalorder %s13, 4
      %s23 = sphi 0, %s25
      %s26 = sphi 0, %s23
      %s27 = sphi 0, %s26
      %s43 = sphi 0, %s27
      %s47 = sphi 0, %s47
      %s49 = sphi 0, %s47
      %s50 = sphi 0, %s49
      %s64 = sphi 0, %s50
      %s68 = sphi 0, %s68
      %s70 = sphi 0, %s68
      %s71 = sphi 0, %s70
      %s85 = sphi 0, %s71
      %s89 = sphi 0, %s89
      %s91 = sphi 0, %s89
      %s92 = sphi 0, %s91
      %s106 = sphi 0, %s92
      %s112 = sphi 0, %s114
      %s115 = sphi 0, %s112
      %s116 = sphi 0, %s115
      %s132 = sphi 0, %s116
    $region4: #{tpu_custom_call.1} parent=1 // loop_header_branch
      %16 = sbr.rel (%p14) target = $region8
    $region5: #{tpu_custom_call.1} parent=1 // loop_body
      %s18 = ssub.s32 %s13, 1
      %s19 = ssub.s32 %s13, 2
      %s20 = sadd.s32 %s13, 1
      %s21 = ssub.s32 %s13, %s20
      %p22 = scmp.eq.s32.totalorder %s21, 0
      %s24 = sadd.s32 %s23, 1
      %s25 = scalar_select %p22, %s23, %s24
      %p28 = pneg %p22
      %p29 = scmp.eq.s32.totalorder %s13, 1
      %p30 = por %p28, %p29
      %p31 = scmp.ne.s32.totalorder %s23, %s26
      %p32 = scmp.eq.s32.totalorder %s13, 0
      %p33 = por %p31, %p32
      %p34 = scmp.ne.s32.totalorder %s23, %s26
      %p35 = scmp.eq.s32.totalorder %s18, 1
      %p36 = por %p34, %p35
      %p37 = scmp.ne.s32.totalorder %s26, %s27
      %p38 = scmp.eq.s32.totalorder %s18, 0
      %p39 = por %p37, %p38
      %p40 = scmp.ne.s32.totalorder %s26, %s27
      %p41 = scmp.eq.s32.totalorder %s19, 1
      %p42 = por %p40, %p41
      %p44 = scmp.ne.s32.totalorder %s27, %s43
      %p45 = scmp.eq.s32.totalorder %s19, 0
      %p46 = por %p44, %p45
      %s48 = sadd.s32 %s47, 1
      %p51 = scmp.eq.s32.totalorder %s13, 1
      %p52 = scmp.ne.s32.totalorder %s47, %s49
      %p53 = scmp.eq.s32.totalorder %s13, 0
      %p54 = por %p52, %p53
      %p55 = scmp.ne.s32.totalorder %s47, %s49
      %p56 = scmp.eq.s32.totalorder %s18, 1
      %p57 = por %p55, %p56
      %p58 = scmp.ne.s32.totalorder %s49, %s50
      %p59 = scmp.eq.s32.totalorder %s18, 0
      %p60 = por %p58, %p59
      %p61 = scmp.ne.s32.totalorder %s49, %s50
      %p62 = scmp.eq.s32.totalorder %s19, 1
      %p63 = por %p61, %p62
      %p65 = scmp.ne.s32.totalorder %s50, %s64
      %p66 = scmp.eq.s32.totalorder %s19, 0
      %p67 = por %p65, %p66
      %s69 = sadd.s32 %s68, 1
      %p72 = scmp.eq.s32.totalorder %s13, 1
      %p73 = scmp.ne.s32.totalorder %s68, %s70
      %p74 = scmp.eq.s32.totalorder %s13, 0
      %p75 = por %p73, %p74
      %p76 = scmp.ne.s32.totalorder %s68, %s70
      %p77 = scmp.eq.s32.totalorder %s18, 1
      %p78 = por %p76, %p77
      %p79 = scmp.ne.s32.totalorder %s70, %s71
      %p80 = scmp.eq.s32.totalorder %s18, 0
      %p81 = por %p79, %p80
      %p82 = scmp.ne.s32.totalorder %s70, %s71
      %p83 = scmp.eq.s32.totalorder %s19, 1
      %p84 = por %p82, %p83
      %p86 = scmp.ne.s32.totalorder %s71, %s85
      %p87 = scmp.eq.s32.totalorder %s19, 0
      %p88 = por %p86, %p87
      %s90 = sadd.s32 %s89, 1
      %p93 = scmp.eq.s32.totalorder %s13, 1
      %p94 = scmp.ne.s32.totalorder %s89, %s91
      %p95 = scmp.eq.s32.totalorder %s13, 0
      %p96 = por %p94, %p95
      %p97 = scmp.ne.s32.totalorder %s89, %s91
      %p98 = scmp.eq.s32.totalorder %s18, 1
      %p99 = por %p97, %p98
      %p100 = scmp.ne.s32.totalorder %s91, %s92
      %p101 = scmp.eq.s32.totalorder %s18, 0
      %p102 = por %p100, %p101
      %p103 = scmp.ne.s32.totalorder %s91, %s92
      %p104 = scmp.eq.s32.totalorder %s19, 1
      %p105 = por %p103, %p104
      %p107 = scmp.ne.s32.totalorder %s92, %s106
      %p108 = scmp.eq.s32.totalorder %s19, 0
      %p109 = por %p107, %p108
      %s110 = ssub.s32 %s13, %s20
      %p111 = scmp.eq.s32.totalorder %s110, 0
      %s113 = sadd.s32 %s112, 1
      %s114 = scalar_select %p111, %s112, %s113
      %p117 = pneg %p111
      %p118 = scmp.eq.s32.totalorder %s13, 1
      %p119 = por %p117, %p118
      %p120 = scmp.ne.s32.totalorder %s112, %s115
      %p121 = scmp.eq.s32.totalorder %s13, 0
      %p122 = por %p120, %p121
      %p123 = scmp.ne.s32.totalorder %s112, %s115
      %p124 = scmp.eq.s32.totalorder %s18, 1
      %p125 = por %p123, %p124
      %p126 = scmp.ne.s32.totalorder %s115, %s116
      %p127 = scmp.eq.s32.totalorder %s18, 0
      %p128 = por %p126, %p127
      %p129 = scmp.ne.s32.totalorder %s115, %s116
      %p130 = scmp.eq.s32.totalorder %s19, 1
      %p131 = por %p129, %p130
      %p133 = scmp.ne.s32.totalorder %s116, %s132
      %p134 = scmp.eq.s32.totalorder %s19, 0
      %p135 = por %p133, %p134
      %p136 = scmp.le.s32.totalorder 1, %s13
      %p137 = scmp.lt.s32.totalorder %s13, 3
      %p138 = pnand %p136, %p137
      %p139 = pneg %p138
      // Predicated region
      $region9: #{tpu_custom_call.1} parent=5 // pred_check
        _
      $region10: #{tpu_custom_call.1} parent=5 // pred_check_branch
        %141 = sbr.rel (%p138) target = $region12
      $region11: #{tpu_custom_call.1} parent=5 // pred_region
        %s142 = ssub.s32 %s13, 1
        // Predicated region
        $region13: #{tpu_custom_call.1} parent=11 // pred_check
          %p143 = pneg %p60
        $region14: #{tpu_custom_call.1} parent=11 // pred_check_branch
          %145 = sbr.rel (%p143) target = $region16
        $region15: #{tpu_custom_call.1} parent=11 // pred_region
          _
        $region16: #{tpu_custom_call.1} parent=11 // pred_fallthru
          _
        // Predicated region
        $region17: #{tpu_custom_call.1} parent=11 // pred_check
          %p146 = pneg %p81
        $region18: #{tpu_custom_call.1} parent=11 // pred_check_branch
          %148 = sbr.rel (%p146) target = $region20
        $region19: #{tpu_custom_call.1} parent=11 // pred_region
          _
        $region20: #{tpu_custom_call.1} parent=11 // pred_fallthru
          _
        // Predicated region
        $region21: #{tpu_custom_call.1} parent=11 // pred_check
          %p149 = pneg %p102
        $region22: #{tpu_custom_call.1} parent=11 // pred_check_branch
          %151 = sbr.rel (%p149) target = $region24
        $region23: #{tpu_custom_call.1} parent=11 // pred_region
          _
        $region24: #{tpu_custom_call.1} parent=11 // pred_fallthru
          _
      $region12: #{tpu_custom_call.1} parent=5 // pred_fallthru
        _
      %p152 = scmp.lt.s32.totalorder %s13, 2
      // Predicated region
      $region25: #{tpu_custom_call.1} parent=5 // pred_check
        %p153 = pneg %p152
      $region26: #{tpu_custom_call.1} parent=5 // pred_check_branch
        %155 = sbr.rel (%p153) target = $region28
      $region27: #{tpu_custom_call.1} parent=5 // pred_region
        // Predicated region
        $region29: #{tpu_custom_call.1} parent=27 // pred_check
          %p156 = pneg %p33
        $region30: #{tpu_custom_call.1} parent=27 // pred_check_branch
          %158 = sbr.rel (%p156) target = $region32
        $region31: #{tpu_custom_call.1} parent=27 // pred_region
          %p159 = scmp.lt.s32.totalorder %s13, 1
          %s160 = scalar_select %p159, %s13, 1
          %s161 = smul.addr %s160, 2
          %s162 = smul.addr %s161, 4
          %s163 = scalar_lea.vmem %s0, %s162
        $region32: #{tpu_custom_call.1} parent=27 // pred_fallthru
          _
      $region28: #{tpu_custom_call.1} parent=5 // pred_fallthru
        _
      %p164 = scmp.le.s32.totalorder 1, %s13
      %p165 = scmp.lt.s32.totalorder %s13, 3
      %p166 = pnand %p164, %p165
      %p167 = pneg %p166
      // Predicated region
      $region33: #{tpu_custom_call.1} parent=5 // pred_check
        _
      $region34: #{tpu_custom_call.1} parent=5 // pred_check_branch
        %169 = sbr.rel (%p166) target = $region36
      $region35: #{tpu_custom_call.1} parent=5 // pred_region
        %s170 = ssub.s32 %s13, 1
        %p171 = scmp.lt.s32.totalorder %s18, 1
        %s172 = scalar_select %p171, %s18, 1
        %s173 = smul.addr %s172, 2
        %s174 = smul.addr %s173, 4
        %s175 = scalar_lea.vmem %s0, %s174
        %p176 = pneg %p39
        %p177 = pneg %p36
        %p178 = pneg %p60
        %p179 = pneg %p57
        %p180 = pneg %p81
        %p181 = pneg %p78
        %p182 = pneg %p102
        %p183 = pneg %p99
        %p184 = pneg %p128
        %p185 = pneg %p125
        %s186 = sand.u32 %s115, 1
        %s187 = scalar_lea.sflag [#allocation3], %s186
        %s188 = sand.u32 %s115, 1
        %s189 = smul.addr %s188, 16
        %s190 = scalar_lea.vmem [#allocation2], %s189
        %p191 = scmp.lt.s32.totalorder %s18, 1
        %s192 = scalar_select %p191, %s18, 1
        %s193 = smul.addr %s192, 2
        %s194 = smul.addr %s193, 4
        %s195 = scalar_lea.vmem %s0, %s194
        %v196 = vlaneseq
        %v197 = vand.u32 %v196, 127
        %v198 = vadd.s32 %v197, 128
        %vm199 = vcmp.lt.s32.totalorder %v197, 0
        %v200 = vsub.s32 0, %v197
        %v201 = vsel %vm199, %v200, %v197
        %v202 = vshrl.u32 %v201, 4
        %v203 = vand.u32 %v201, 15
        %v204 = vsub.s32 0, %v203
        %v205 = vsel %vm199, %v204, %v203
        %vm206 = vcmp.lt.s32.totalorder %v198, 0
        %v207 = vsub.s32 0, %v198
        %v208 = vsel %vm206, %v207, %v198
        %v209 = vshrl.u32 %v208, 4
        %v210 = vand.u32 %v208, 15
        %v211 = vsub.s32 0, %v210
        %v212 = vsel %vm206, %v211, %v210
        %vm213 = vcmp.ne.s32.totalorder %v205, 0
        %vm214 = vcmp.ne.s32.totalorder %v212, 0
        %vm215 = vcmp.lt.s32.totalorder %v205, 0
        %vm216 = vcmp.lt.s32.totalorder %v212, 0
        %vm217 = vmand %vm215, %vm213
        %vm218 = vmand %vm216, %vm214
        %v219 = vadd.s32 %v205, 16
        %v220 = vadd.s32 %v212, 16
        %v221 = vsel %vm217, %v219, %v205
        %v222 = vsel %vm218, %v220, %v212
        %vm223 = vcmp.ne.s32.totalorder %v221, 0
        %vm224 = vcmp.ne.s32.totalorder %v222, 0
        %v225 = vsel %vm223, 1.0, 0.0
        %v226 = vsel %vm224, 1.0, 0.0
        %vm227 = vcmp.ne.s32.totalorder %v221, 15
        %vm228 = vcmp.ne.s32.totalorder %v222, 15
        %v229 = vsel %vm227, 1.0, 0.0
        %v230 = vsel %vm228, 1.0, 0.0
        %v231 = vld [vmem:[%s1] sm:$0xf]
        %233 = vset.pattern.permute.xlu0 0
        %234 = vperm.xlu0 %233, %v231
        %v235 = vpop.permute.xlu0 %234
        %v237 = vmul.f32 %v235, %v225
        %v238 = vmul.f32 %v235, %v226
        %239 = vset.pattern.permute.xlu0 1
        %240 = vperm.xlu0 %239, %v231
        %v241 = vpop.permute.xlu0 %240
        %243 = vset.pattern.permute.xlu0 2
        %244 = vperm.xlu0 %243, %v231
        %v245 = vpop.permute.xlu0 %244
        %v247 = vmul.f32 %v245, %v229
        %v248 = vmul.f32 %v245, %v230
        %249 = vset.pattern.permute.xlu0 3
        %250 = vperm.xlu0 %249, %v231
        %v251 = vpop.permute.xlu0 %250
        %v253 = vmul.f32 %v251, %v225
        %v254 = vmul.f32 %v251, %v226
        %255 = vset.pattern.permute.xlu0 4
        %256 = vperm.xlu0 %255, %v231
        %v257 = vpop.permute.xlu0 %256
        %258 = vset.pattern.permute.xlu0 5
        %259 = vperm.xlu0 %258, %v231
        %v260 = vpop.permute.xlu0 %259
        %v262 = vmul.f32 %v260, %v229
        %v263 = vmul.f32 %v260, %v230
        %264 = vset.pattern.permute.xlu0 6
        %265 = vperm.xlu0 %264, %v231
        %v266 = vpop.permute.xlu0 %265
        %v268 = vmul.f32 %v266, %v225
        %v269 = vmul.f32 %v266, %v226
        %270 = vset.pattern.permute.xlu0 7
        %271 = vperm.xlu0 %270, %v231
        %v272 = vpop.permute.xlu0 %271
        %274 = vset.pattern.permute.xlu0 8
        %275 = vperm.xlu0 %274, %v231
        %v276 = vpop.permute.xlu0 %275
        %v278 = vmul.f32 %v276, %v229
        %v279 = vmul.f32 %v276, %v230
        %v280 = vld [vmem:[%s2] sm:$0xff]
        %v281 = vld [vmem:[%s3] sm:$0xff]
        %v282 = vld [vmem:[%s195] sm:$0xff]
        %v284 = vcombine.high %v282, %v282
        %285 = vrot.lane.b32.xlu0 %v282, 17
        %v286 = vpop.permute.xlu0 %285
        %287 = vrot.lane.b32.xlu0 %v284, 17
        %v288 = vpop.permute.xlu0 %287
        %vm289 = vcmask 138240
        %v290 = vsel %vm289, %v286, %v288
        %v293 = vsel %vm289, 0.0, %v286
        %v294 = vmul.f32 %v293, %v237
        %v295 = vmul.f32 %v290, %v238
        %296 = vrot.lane.b32.xlu0 %v282, 16
        %v297 = vpop.permute.xlu0 %296
        %298 = vrot.lane.b32.xlu0 %v284, 16
        %v299 = vpop.permute.xlu0 %298
        %vm300 = vcmask 130048
        %v301 = vsel %vm300, %v297, %v299
        %v304 = vsel %vm300, 0.0, %v297
        %v305 = vmul.f32 %v304, %v241
        %v306 = vmul.f32 %v301, %v241
        %v307 = vadd.f32 %v294, %v305
        %v308 = vadd.f32 %v295, %v306
        %309 = vrot.lane.b32.xlu0 %v282, 15
        %v310 = vpop.permute.xlu0 %309
        %311 = vrot.lane.b32.xlu0 %v284, 15
        %v312 = vpop.permute.xlu0 %311
        %vm313 = vcmask 121856
        %v314 = vsel %vm313, %v310, %v312
        %v317 = vsel %vm313, 0.0, %v310
        %v318 = vmul.f32 %v317, %v247
        %v319 = vmul.f32 %v314, %v248
        %v320 = vadd.f32 %v307, %v318
        %v321 = vadd.f32 %v308, %v319
        %322 = vrot.lane.b32.xlu0 %v282, 1
        %v323 = vpop.permute.xlu0 %322
        %324 = vrot.lane.b32.xlu0 %v284, 1
        %v325 = vpop.permute.xlu0 %324
        %vm326 = vcmask 7168
        %v327 = vsel %vm326, %v323, %v325
        %v330 = vsel %vm326, 0.0, %v323
        %v331 = vmul.f32 %v330, %v253
        %v332 = vmul.f32 %v327, %v254
        %v333 = vadd.f32 %v320, %v331
        %v334 = vadd.f32 %v321, %v332
        %v336 = vunpack.c.l.s4 839922192
        %v337 = vunpack.c.0.s8 %v336
        %v338 = vlaneseq
        %v339 = vshrl.u32 %v338, 7
        %v340 = vsub.s32 %v337, %v339
        %v341 = vrot.slane %v257, %v340
        %v343 = vmul.f32 %v282, %v341
        %v345 = vcombine.high %v343, %v343
        %v347 = vadd.f32 %v333, %v343
        %v348 = vadd.f32 %v334, %v345
        %349 = vrot.lane.b32.xlu0 %v282, 127
        %v350 = vpop.permute.xlu0 %349
        %351 = vrot.lane.b32.xlu0 %v284, 127
        %v352 = vpop.permute.xlu0 %351
        %vm353 = vcmask 1039360
        %v354 = vsel %vm353, %v350, %v352
        %v357 = vsel %vm353, %v352, 0.0
        %v358 = vmul.f32 %v354, %v262
        %v359 = vmul.f32 %v357, %v263
        %v360 = vadd.f32 %v347, %v358
        %v361 = vadd.f32 %v348, %v359
        %362 = vrot.lane.b32.xlu0 %v282, 113
        %v363 = vpop.permute.xlu0 %362
        %364 = vrot.lane.b32.xlu0 %v284, 113
        %v365 = vpop.permute.xlu0 %364
        %vm366 = vcmask 924672
        %v367 = vsel %vm366, %v363, %v365
        %v370 = vsel %vm366, %v365, 0.0
        %v371 = vmul.f32 %v367, %v268
        %v372 = vmul.f32 %v370, %v269
        %v373 = vadd.f32 %v360, %v371
        %v374 = vadd.f32 %v361, %v372
        %375 = vrot.lane.b32.xlu0 %v282, 112
        %v376 = vpop.permute.xlu0 %375
        %377 = vrot.lane.b32.xlu0 %v284, 112
        %v378 = vpop.permute.xlu0 %377
        %vm379 = vcmask 916480
        %v380 = vsel %vm379, %v376, %v378
        %v383 = vsel %vm379, %v378, 0.0
        %v384 = vmul.f32 %v380, %v272
        %v385 = vmul.f32 %v383, %v272
        %v386 = vadd.f32 %v373, %v384
        %v387 = vadd.f32 %v374, %v385
        %388 = vrot.lane.b32.xlu0 %v282, 111
        %v389 = vpop.permute.xlu0 %388
        %390 = vrot.lane.b32.xlu0 %v284, 111
        %v391 = vpop.permute.xlu0 %390
        %vm392 = vcmask 908288
        %v393 = vsel %vm392, %v389, %v391
        %v396 = vsel %vm392, %v391, 0.0
        %v397 = vmul.f32 %v393, %v278
        %v398 = vmul.f32 %v396, %v279
        %v399 = vadd.f32 %v386, %v397
        %v400 = vadd.f32 %v387, %v398
        %402 = vset.pattern.permute.xlu0 0
        %403 = vperm.xlu0 %402, %v281
        %v404 = vpop.permute.xlu0 %403
        %vm406 = vcmask 31744
        %v408 = vsel %vm406, %v280, 0
        %vm410 = vcmask 1043456
        %v412 = vsel %vm410, %v399, 0
        %v415 = vsel %vm410, %v400, 0
        %417 = vmatprep.subr.mxu0 0.0
        %418 = vmatpush1.msra.mxu0 0.0
        %419 = vmatprep.subr.mxu0 0.0
        %420 = vmatpush1.msra.mxu0 0.0
        %421 = vmatprep.subr.mxu0 0.0
        %422 = vmatpush1.msra.mxu0 0.0
        %423 = vmatprep.subr.mxu0 0.0
        %424 = vmatpush1.msra.mxu0 0.0
        %425 = vmatprep.subr.mxu0 0.0
        %426 = vmatpush1.msra.mxu0 0.0
        %427 = vmatprep.subr.mxu0 0.0
        %428 = vmatpush1.msra.mxu0 0.0
        %429 = vmatprep.subr.mxu0 0.0
        %430 = vmatpush1.msra.mxu0 0.0
        %431 = vmatprep.subr.mxu0 0.0
        %432 = vmatpush1.msra.mxu0 0.0
        %433 = vmatprep.subr.mxu0 0.0
        %434 = vmatpush1.msra.mxu0 0.0
        %435 = vmatprep.subr.mxu0 0.0
        %436 = vmatpush1.msra.mxu0 0.0
        %437 = vmatprep.subr.mxu0 0.0
        %438 = vmatpush1.msra.mxu0 0.0
        %439 = vmatprep.subr.mxu0 0.0
        %440 = vmatpush1.msra.mxu0 0.0
        %441 = vmatprep.subr.mxu0 0.0
        %442 = vmatpush1.msra.mxu0 0.0
        %443 = vmatprep.subr.mxu0 0.0
        %444 = vmatpush1.msra.mxu0 0.0
        %445 = vmatprep.subr.mxu0 0.0
        %446 = vmatpush1.msra.mxu0 0.0
        %447 = vmatprep.subr.mxu0 %v415
        %448 = vmatpush1.msra.mxu0 %v412
        %449 = vmatprep.subr.mxu0 0.0
        %450 = vmatpush2.msra.mxu0 0.0
        %451 = vmatprep.subr.mxu0 0.0
        %452 = vmatpush2.msra.mxu0 0.0
        %453 = vmatprep.subr.mxu0 0.0
        %454 = vmatpush2.msra.mxu0 0.0
        %455 = vmatprep.subr.mxu0 0.0
        %456 = vmatpush2.msra.mxu0 0.0
        %457 = vmatprep.subr.mxu0 0.0
        %458 = vmatpush2.msra.mxu0 0.0
        %459 = vmatprep.subr.mxu0 0.0
        %460 = vmatpush2.msra.mxu0 0.0
        %461 = vmatprep.subr.mxu0 0.0
        %462 = vmatpush2.msra.mxu0 0.0
        %463 = vmatprep.subr.mxu0 0.0
        %464 = vmatpush2.msra.mxu0 0.0
        %465 = vmatprep.subr.mxu0 0.0
        %466 = vmatpush2.msra.mxu0 0.0
        %467 = vmatprep.subr.mxu0 0.0
        %468 = vmatpush2.msra.mxu0 0.0
        %469 = vmatprep.subr.mxu0 0.0
        %470 = vmatpush2.msra.mxu0 0.0
        %471 = vmatprep.subr.mxu0 0.0
        %472 = vmatpush2.msra.mxu0 0.0
        %473 = vmatprep.subr.mxu0 0.0
        %474 = vmatpush2.msra.mxu0 0.0
        %475 = vmatprep.subr.mxu0 0.0
        %476 = vmatpush2.msra.mxu0 0.0
        %477 = vmatprep.subr.mxu0 0.0
        %478 = vmatpush2.msra.mxu0 0.0
        %479 = vmatprep.subr.mxu0 0.0
        %480 = vmatpush2.msra.mxu0 0.0
        %481 = vmatprep.mubr.f32.mxu0 0.0
        %482 = vmatmul.mubr.f32.gmra.mxu0 %v408
        %v483 = vpop.f32.mrf.mxu0
        %v484 = vadd.f32 %v404, %v483
        %v485 = vpop.f32.mrf.mxu0
        %v486 = vadd.f32 %v404, %v485
        %487 = vdwg.mxu0
        %488 = vst [vmem:[%s190] sm:$0xff] %v484
        %489 = vst [vmem:[%s190 + $0x8] sm:$0xff] %v486
        %s490 = sand.u32 %s115, 1
        %s491 = scalar_lea.sflag [#allocation3], %s490
        %s492 = sand.u32 %s115, 1
        %s493 = smul.addr %s492, 16
        %s494 = scalar_lea.vmem [#allocation2], %s493
        // Predicated region
        $region37: #{tpu_custom_call.1} parent=35 // pred_check
          %p495 = pneg %p125
        $region38: #{tpu_custom_call.1} parent=35 // pred_check_branch
          %497 = sbr.rel (%p495) target = $region40
        $region39: #{tpu_custom_call.1} parent=35 // pred_region
          %s499 = ssub.s32 256, 256
          %500 = vsyncadd %s491, %s499
          %s501 = smul.addr %s18, 2
          %s502 = smul.addr %s501, 128
          %s503 = scalar_lea.hbm %s4, %s502
          %s505 = sshll.u32 %s494, 4
          %s506 = int_to_ptr.vmem [resolvable:$true] %s505
          %508 = dma.vmem_to_hbm [thread:$0]  %s506, 256, %s503, %s491
        $region40: #{tpu_custom_call.1} parent=35 // pred_fallthru
          _
      $region36: #{tpu_custom_call.1} parent=5 // pred_fallthru
        _
      %p509 = scmp.le.s32.totalorder 2, %s13
      // Predicated region
      $region41: #{tpu_custom_call.1} parent=5 // pred_check
        %p510 = pneg %p509
      $region42: #{tpu_custom_call.1} parent=5 // pred_check_branch
        %512 = sbr.rel (%p510) target = $region44
      $region43: #{tpu_custom_call.1} parent=5 // pred_region
        %s513 = ssub.s32 %s13, 2
        // Predicated region
        $region45: #{tpu_custom_call.1} parent=43 // pred_check
          %p514 = pneg %p131
        $region46: #{tpu_custom_call.1} parent=43 // pred_check_branch
          %516 = sbr.rel (%p514) target = $region48
        $region47: #{tpu_custom_call.1} parent=43 // pred_region
          %s517 = sand.u32 %s116, 1
          %s518 = scalar_lea.sflag [#allocation3], %s517
          %s519 = sand.u32 %s116, 1
          %s520 = smul.addr %s519, 16
          %s521 = scalar_lea.vmem [#allocation2], %s520
          %522 = dma.done %s518, 256
        $region48: #{tpu_custom_call.1} parent=43 // pred_fallthru
          _
      $region44: #{tpu_custom_call.1} parent=5 // pred_fallthru
        _
    $region6: #{tpu_custom_call.1} parent=1 // loop_footer
      %s17 = sadd.s32 1, %s13
    $region7: #{tpu_custom_call.1} parent=1 // loop_footer_branch
      %12 = sbr.rel target = $region3
    $region8: #{tpu_custom_call.1} parent=1 // loop_exit
      _
    %523 = vsyncpa [#allocation3], 1
    %s524 = scalar_lea.sflag [#allocation3], 1
    %525 = vsyncpa %s524, 1

</llo_original>
